<compile_context>
chip_gen: v5e
topology: v5e:2x2
jax: 0.10.0
libtpu: 0.0.40
codegen_flags: <defaults>
</compile_context>

<pallas_src>
import jax
import jax.numpy as jnp
from jax.experimental import pallas as pl
from jax.experimental.pallas import tpu as pltpu

# ---- synthetic model configuration (small shapes) ----
B, CIN, H, W = 2, 4, 16, 16        # batch, input channels, spatial
KH = KW = 3                        # 3x3 conv
KT = KH * KW                       # 9 taps
C1 = 32                            # hidden conv channels
NC = 16                            # number of classes
NO = 4 + NC                        # box(4) + classes  -> 20
HW = H * W                         # anchors per image -> 256 (lane dim)
K = KT * CIN                       # im2col depth      -> 36

assert HW % 128 == 0, "anchor axis must be lane-dense (multiple of 128)"


def _detect_grid_steps(num_cores=None):
    """Number of grid steps (== images handled in parallel across TCs).

    2-way batch grid on chips with 2 TensorCores per device (v4 / v5p
    megacore, TPU7x); a single grid step (whole batch folded into the lane
    axis) on single-TC chips (v5e / v6e) and on CPU / interpret backends.
    Pass `num_cores` explicitly for AOT / mock compilation determinism.
    """
    if num_cores is not None:
        n = int(num_cores)
    else:
        try:
            kind = jax.devices()[0].device_kind.lower()
        except Exception:
            return 1
        n = 2 if any(tag in kind for tag in ("v4", "v5p", "7x", "v7")) else 1
    return n if (n > 1 and B % n == 0) else 1


def _make_detector_kernel(bb):
    """bb = number of images folded into the lane axis per grid step."""

    def kernel(x_ref, w1_ref, b1_ref, w2_ref, b2_ref, o_ref):
        # x_ref : (1, K, bb*HW)  f32   im2col activations, lane-dense
        # w1_ref: (C1, K)        f32   3x3 conv weights (transposed)
        # b1_ref: (C1, 1)        f32
        # w2_ref: (NO, C1)       f32   1x1 head weights (transposed)
        # b2_ref: (NO, 1)        f32
        # o_ref : (bb, NO, HW)   f32   raw predictions, lane-dense
        p = x_ref[0]                                          # (K, bb*HW)
        # Single K=36 MXU matmul for the 3x3 conv over the whole block.
        h = jnp.dot(w1_ref[...], p, preferred_element_type=jnp.float32)
        h = h + b1_ref[...]                                   # (C1,1) bcast
        h = h * jax.nn.sigmoid(h)                             # SiLU, f32 EUP
        # Single matmul for the 1x1 detection head.
        y = jnp.dot(w2_ref[...], h, preferred_element_type=jnp.float32)
        y = y + b2_ref[...]                                   # (NO, bb*HW)
        # Write each image as one unmasked 256-lane slab (static, aligned).
        for b in range(bb):
            o_ref[b] = y[:, b * HW:(b + 1) * HW].astype(o_ref.dtype)

    return kernel


def _im2col(im_nchw):
    """(B, CIN, H, W) -> (B, K, HW) f32, tap-major / channel-minor ordering."""
    x = im_nchw.astype(jnp.float32)
    xp = jnp.pad(x, ((0, 0), (0, 0), (1, 1), (1, 1)))
    taps = []
    for dy in range(KH):
        for dx in range(KW):
            taps.append(xp[:, :, dy:dy + H, dx:dx + W])       # (B,CIN,H,W)
    return jnp.stack(taps, axis=1).reshape(B, K, HW)


def detector_forward(im_nchw, w1, b1, w2, b2, num_cores=None):
    """Synthetic Detector.forward: NCHW image -> (B, 4+nc, anchors) raw preds."""
    grid_n = _detect_grid_steps(num_cores)
    bb = B // grid_n
    n_lanes = bb * HW

    # Wrapper prep: im2col (layout plumbing only) + one-time weight re-layout.
    patches = _im2col(im_nchw)                                # (B, K, HW)
    x2d = (patches.reshape(grid_n, bb, K, HW)
                  .transpose(0, 2, 1, 3)
                  .reshape(grid_n, K, n_lanes))               # (grid_n,K,bb*HW)
    w1k = w1.T.astype(jnp.float32)                            # (C1, K)
    w2k = w2.T.astype(jnp.float32)                            # (NO, C1)
    b1k = b1.reshape(C1, 1).astype(jnp.float32)
    b2k = b2.reshape(NO, 1).astype(jnp.float32)

    flops = 2 * B * HW * (K * C1 + C1 * NO)
    bytes_accessed = (x2d.size * 4 + w1k.size * 4 + b1k.size * 4
                      + w2k.size * 4 + b2k.size * 4 + B * NO * HW * 4)
    cost = pl.CostEstimate(flops=flops, transcendentals=B * HW * C1,
                           bytes_accessed=bytes_accessed)

    out = pl.pallas_call(
        _make_detector_kernel(bb),
        out_shape=jax.ShapeDtypeStruct((B, NO, HW), jnp.float32),
        grid_spec=pltpu.PrefetchScalarGridSpec(
            num_scalar_prefetch=0,
            grid=(grid_n,),
            in_specs=[
                pl.BlockSpec((1, K, n_lanes), lambda g: (g, 0, 0)),
                pl.BlockSpec((C1, K), lambda g: (0, 0)),
                pl.BlockSpec((C1, 1), lambda g: (0, 0)),
                pl.BlockSpec((NO, C1), lambda g: (0, 0)),
                pl.BlockSpec((NO, 1), lambda g: (0, 0)),
            ],
            out_specs=pl.BlockSpec((bb, NO, HW), lambda g: (g, 0, 0)),
        ),
        compiler_params=pltpu.CompilerParams(
            dimension_semantics=("parallel",)),
        cost_estimate=cost,
    )(x2d, w1k, b1k, w2k, b2k)
    # Output is already (batch, 4+nc, anchors): no wrapper transpose needed.
    return out
    # TODO(synk): non_max_suppression (jit branch of Detector.forward) has no
    # clean Pallas equivalent (dynamic-shape, data-dependent output); omitted.


def _reference_forward(im_nchw, w1, b1, w2, b2):
    """Pure-JAX f32 reference for correctness checking."""
    patches = _im2col(im_nchw)                                # (B, K, HW)
    h = jnp.einsum("kc,bkp->bcp", w1, patches) + b1[None, :, None]
    h = h * jax.nn.sigmoid(h)
    y = jnp.einsum("cn,bcp->bnp", w2, h) + b2[None, :, None]
    return y                                                  # (B, NO, HW)


if __name__ == "__main__":
    key = jax.random.PRNGKey(0)
    k_im, k_w1, k_b1, k_w2, k_b2 = jax.random.split(key, 5)

    # Deterministic synthetic parameters (no checkpoint load).
    im = jax.random.normal(k_im, (B, CIN, H, W), dtype=jnp.float32)
    w1 = 0.1 * jax.random.normal(k_w1, (K, C1), dtype=jnp.float32)
    b1 = 0.1 * jax.random.normal(k_b1, (C1,), dtype=jnp.float32)
    w2 = 0.1 * jax.random.normal(k_w2, (C1, NO), dtype=jnp.float32)
    b2 = 0.1 * jax.random.normal(k_b2, (NO,), dtype=jnp.float32)

    fwd = jax.jit(detector_forward)
    y = jax.block_until_ready(fwd(im, w1, b1, w2, b2))
    y_ref = jax.block_until_ready(_reference_forward(im, w1, b1, w2, b2))

    assert y.shape == (B, NO, HW), y.shape
    max_err = float(jnp.max(jnp.abs(y - y_ref)))
    assert jnp.allclose(y, y_ref, atol=2e-3, rtol=2e-3), max_err

    print("KERNEL_OK")
</pallas_src>

<mosaic_0001>
module attributes {stable_mosaic.version = 11 : i64} {
  func.func @kernel(%arg0: i32, %arg1: memref<1x36x512xf32, #tpu.memory_space<vmem>>, %arg2: memref<32x36xf32, #tpu.memory_space<vmem>>, %arg3: memref<32x1xf32, #tpu.memory_space<vmem>>, %arg4: memref<20x32xf32, #tpu.memory_space<vmem>>, %arg5: memref<20x1xf32, #tpu.memory_space<vmem>>, %arg6: memref<2x20x256xf32, #tpu.memory_space<vmem>>) attributes {dimension_semantics = [#tpu.dimension_semantics<parallel>], iteration_bounds = array<i64: 1>, scalar_prefetch = 0 : i64, scratch_operands = 0 : i64, tpu.core_type = #tpu.core_type<tc>, window_params = [{transform_indices = @transform_0, window_bounds = array<i64: 1, 36, 512>}, {pipeline_mode = #tpu.pipeline_mode<synchronous>, transform_indices = @transform_1, window_bounds = array<i64: 32, 36>}, {pipeline_mode = #tpu.pipeline_mode<synchronous>, transform_indices = @transform_2, window_bounds = array<i64: 32, 1>}, {pipeline_mode = #tpu.pipeline_mode<synchronous>, transform_indices = @transform_3, window_bounds = array<i64: 20, 32>}, {pipeline_mode = #tpu.pipeline_mode<synchronous>, transform_indices = @transform_4, window_bounds = array<i64: 20, 1>}, {transform_indices = @transform_5, window_bounds = array<i64: 2, 20, 256>}]} {
    %c0 = arith.constant 0 : index
    %c0_0 = arith.constant 0 : index
    %c0_1 = arith.constant 0 : index
    %0 = vector.load %arg1[%c0, %c0_0, %c0_1] : memref<1x36x512xf32, #tpu.memory_space<vmem>>, vector<1x36x512xf32>
    %1 = vector.shape_cast %0 : vector<1x36x512xf32> to vector<36x512xf32>
    %c0_2 = arith.constant 0 : index
    %c0_3 = arith.constant 0 : index
    %2 = vector.load %arg2[%c0_2, %c0_3] : memref<32x36xf32, #tpu.memory_space<vmem>>, vector<32x36xf32>
    %cst = arith.constant dense<0.000000e+00> : vector<32x512xf32>
    %3 = tpu.matmul %2, %1, %cst {dimension_numbers = #tpu.dot_dimension_numbers<[1], [0], [0], [1], [0, 0, 1, 1], [], []>} : vector<32x36xf32>, vector<36x512xf32>, vector<32x512xf32> -> vector<32x512xf32>
    %c0_4 = arith.constant 0 : index
    %c0_5 = arith.constant 0 : index
    %4 = vector.load %arg3[%c0_4, %c0_5] : memref<32x1xf32, #tpu.memory_space<vmem>>, vector<32x1xf32>
    %5 = vector.broadcast %4 : vector<32x1xf32> to vector<32x512xf32>
    %6 = arith.addf %3, %5 : vector<32x512xf32>
    %7 = arith.negf %6 : vector<32x512xf32>
    %8 = math.exp %7 : vector<32x512xf32>
    %cst_6 = arith.constant 1.000000e+00 : f32
    %9 = vector.broadcast %cst_6 : f32 to vector<32x512xf32>
    %10 = arith.addf %9, %8 : vector<32x512xf32>
    %11 = arith.divf %9, %10 : vector<32x512xf32>
    %12 = arith.mulf %6, %11 : vector<32x512xf32>
    %c0_7 = arith.constant 0 : index
    %c0_8 = arith.constant 0 : index
    %13 = vector.load %arg4[%c0_7, %c0_8] : memref<20x32xf32, #tpu.memory_space<vmem>>, vector<20x32xf32>
    %cst_9 = arith.constant dense<0.000000e+00> : vector<20x512xf32>
    %14 = tpu.matmul %13, %12, %cst_9 {dimension_numbers = #tpu.dot_dimension_numbers<[1], [0], [0], [1], [0, 0, 1, 1], [], []>} : vector<20x32xf32>, vector<32x512xf32>, vector<20x512xf32> -> vector<20x512xf32>
    %c0_10 = arith.constant 0 : index
    %c0_11 = arith.constant 0 : index
    %15 = vector.load %arg5[%c0_10, %c0_11] : memref<20x1xf32, #tpu.memory_space<vmem>>, vector<20x1xf32>
    %16 = vector.broadcast %15 : vector<20x1xf32> to vector<20x512xf32>
    %17 = arith.addf %14, %16 : vector<20x512xf32>
    %18 = vector.extract_strided_slice %17 {offsets = [0, 0], sizes = [20, 256], strides = [1, 1]} : vector<20x512xf32> to vector<20x256xf32>
    %c0_12 = arith.constant 0 : index
    %c0_13 = arith.constant 0 : index
    %c0_14 = arith.constant 0 : index
    %19 = vector.load %arg6[%c0_12, %c0_13, %c0_14] : memref<2x20x256xf32, #tpu.memory_space<vmem>>, vector<1x20x256xf32>
    %20 = vector.shape_cast %19 : vector<1x20x256xf32> to vector<20x256xf32>
    %21 = vector.shape_cast %18 : vector<20x256xf32> to vector<1x20x256xf32>
    tpu.vector_store %arg6[%c0_12, %c0_13, %c0_14], %21 {strides = array<i32>} : memref<2x20x256xf32, #tpu.memory_space<vmem>>, vector<1x20x256xf32>,
    %22 = vector.extract_strided_slice %17 {offsets = [0, 256], sizes = [20, 256], strides = [1, 1]} : vector<20x512xf32> to vector<20x256xf32>
    %c1 = arith.constant 1 : index
    %c0_15 = arith.constant 0 : index
    %c0_16 = arith.constant 0 : index
    %23 = vector.load %arg6[%c1, %c0_15, %c0_16] : memref<2x20x256xf32, #tpu.memory_space<vmem>>, vector<1x20x256xf32>
    %24 = vector.shape_cast %23 : vector<1x20x256xf32> to vector<20x256xf32>
    %25 = vector.shape_cast %22 : vector<20x256xf32> to vector<1x20x256xf32>
    tpu.vector_store %arg6[%c1, %c0_15, %c0_16], %25 {strides = array<i32>} : memref<2x20x256xf32, #tpu.memory_space<vmem>>, vector<1x20x256xf32>,
    return
  }
  func.func @transform_0(%arg0: i32) -> (i32, i32, i32) {
    %c0_i32 = arith.constant 0 : i32
    %c0_i32_0 = arith.constant 0 : i32
    %c0_i32_1 = arith.constant 0 : i32
    return %arg0, %c0_i32, %c0_i32_0 : i32, i32, i32
  }
  func.func @transform_1(%arg0: i32) -> (i32, i32) {
    %c0_i32 = arith.constant 0 : i32
    %c0_i32_0 = arith.constant 0 : i32
    %c0_i32_1 = arith.constant 0 : i32
    return %c0_i32, %c0_i32_0 : i32, i32
  }
  func.func @transform_2(%arg0: i32) -> (i32, i32) {
    %c0_i32 = arith.constant 0 : i32
    %c0_i32_0 = arith.constant 0 : i32
    %c0_i32_1 = arith.constant 0 : i32
    return %c0_i32, %c0_i32_0 : i32, i32
  }
  func.func @transform_3(%arg0: i32) -> (i32, i32) {
    %c0_i32 = arith.constant 0 : i32
    %c0_i32_0 = arith.constant 0 : i32
    %c0_i32_1 = arith.constant 0 : i32
    return %c0_i32, %c0_i32_0 : i32, i32
  }
  func.func @transform_4(%arg0: i32) -> (i32, i32) {
    %c0_i32 = arith.constant 0 : i32
    %c0_i32_0 = arith.constant 0 : i32
    %c0_i32_1 = arith.constant 0 : i32
    return %c0_i32, %c0_i32_0 : i32, i32
  }
  func.func @transform_5(%arg0: i32) -> (i32, i32, i32) {
    %c0_i32 = arith.constant 0 : i32
    %c0_i32_0 = arith.constant 0 : i32
    %c0_i32_1 = arith.constant 0 : i32
    return %arg0, %c0_i32, %c0_i32_0 : i32, i32, i32
  }
}

</mosaic_0001>

<llo_original>
// kernel: detector_forward.1
$region0: #{detector_forward.1}
  #allocation0 [shape = 'u32[]', space=smem, size = 0x4, offset = 0x4, fixed_abs, tag = 'smem constant byte address 0x4 - core index']
  #allocation1 [shape = 'u32[72,128]{1,0:T(1,128)}', space=vmem, size = 0x9000, scoped, tag = 'internal scratch']
  %s0 = inlined_call_operand.vmem [shape: f32[1,36,512], index: 0, kind: input, shape index: {}]
  %s1 = inlined_call_operand.vmem [shape: f32[32,36], index: 1, kind: input, shape index: {}]
  %s2 = inlined_call_operand.vmem [shape: f32[32,1], index: 2, kind: input, shape index: {}]
  %s3 = inlined_call_operand.vmem [shape: f32[20,32], index: 3, kind: input, shape index: {}]
  %s4 = inlined_call_operand.vmem [shape: f32[20,1], index: 4, kind: input, shape index: {}]
  %s5 = inlined_call_operand.vmem [shape: f32[2,20,256], index: 5, kind: output, shape index: {}]
  %s6 = sld [smem:[#allocation0]]
  $region30: #{detector_forward.1} parent=0
    _
  %s8 = ssub.s32 1, %s6
  %s9 = scalar_select 0, %s8, %s6
  // Predicated region
  $region2: #{detector_forward.1} parent=0 // pred_check
    _
  $region3: #{detector_forward.1} parent=0 // pred_check_branch
    %11 = sbr.rel (0) target = $region5
  $region4: #{detector_forward.1} parent=0 // pred_region
    _
  $region5: #{detector_forward.1} parent=0 // pred_fallthru
    _
  // Predicated region
  $region6: #{detector_forward.1} parent=0 // pred_check
    _
  $region7: #{detector_forward.1} parent=0 // pred_check_branch
    %13 = sbr.rel (0) target = $region9
  $region8: #{detector_forward.1} parent=0 // pred_region
    _
  $region9: #{detector_forward.1} parent=0 // pred_fallthru
    _
  // Predicated region
  $region10: #{detector_forward.1} parent=0 // pred_check
    _
  $region11: #{detector_forward.1} parent=0 // pred_check_branch
    %15 = sbr.rel (0) target = $region13
  $region12: #{detector_forward.1} parent=0 // pred_region
    _
  $region13: #{detector_forward.1} parent=0 // pred_fallthru
    _
  // Predicated region
  $region14: #{detector_forward.1} parent=0 // pred_check
    _
  $region15: #{detector_forward.1} parent=0 // pred_check_branch
    %17 = sbr.rel (0) target = $region17
  $region16: #{detector_forward.1} parent=0 // pred_region
    _
  $region17: #{detector_forward.1} parent=0 // pred_fallthru
    _
  // Predicated region
  $region18: #{detector_forward.1} parent=0 // pred_check
    _
  $region19: #{detector_forward.1} parent=0 // pred_check_branch
    %19 = sbr.rel (0) target = $region21
  $region20: #{detector_forward.1} parent=0 // pred_region
    _
  $region21: #{detector_forward.1} parent=0 // pred_fallthru
    _
  %v20 = vld [vmem:[%s0] sm:$0xff]
  %v21 = vld [vmem:[%s0 + $0x8] sm:$0xff]
  %v22 = vld [vmem:[%s0 + $0x10] sm:$0xff]
  %v23 = vld [vmem:[%s0 + $0x18] sm:$0xff]
  %v24 = vld [vmem:[%s0 + $0x20] sm:$0xff]
  %v25 = vld [vmem:[%s0 + $0x28] sm:$0xff]
  %v26 = vld [vmem:[%s0 + $0x30] sm:$0xff]
  %v27 = vld [vmem:[%s0 + $0x38] sm:$0xff]
  %v28 = vld [vmem:[%s0 + $0x40] sm:$0xff]
  %v29 = vld [vmem:[%s0 + $0x48] sm:$0xff]
  %v30 = vld [vmem:[%s0 + $0x50] sm:$0xff]
  %v31 = vld [vmem:[%s0 + $0x58] sm:$0xff]
  %v32 = vld [vmem:[%s0 + $0x60] sm:$0xff]
  %v33 = vld [vmem:[%s0 + $0x68] sm:$0xff]
  %v34 = vld [vmem:[%s0 + $0x70] sm:$0xff]
  %v35 = vld [vmem:[%s0 + $0x78] sm:$0xff]
  %v36 = vld [vmem:[%s0 + $0x80] sm:$0xf]
  %v37 = vld [vmem:[%s0 + $0x88] sm:$0xf]
  %v38 = vld [vmem:[%s0 + $0x90] sm:$0xf]
  %v39 = vld [vmem:[%s0 + $0x98] sm:$0xf]
  %v40 = vld [vmem:[%s1] sm:$0xff]
  %v41 = vld [vmem:[%s1 + $0x8] sm:$0xff]
  %v42 = vld [vmem:[%s1 + $0x10] sm:$0xff]
  %v43 = vld [vmem:[%s1 + $0x18] sm:$0xff]
  %v44 = vld [vmem:[%s2] sm:$0xff]
  %v45 = vld [vmem:[%s2 + $0x8] sm:$0xff]
  %v46 = vld [vmem:[%s2 + $0x10] sm:$0xff]
  %v47 = vld [vmem:[%s2 + $0x18] sm:$0xff]
  %49 = vset.pattern.permute.xlu0 0
  %50 = vperm.xlu0 %49, %v44
  %v51 = vpop.permute.xlu0 %50
  %54 = vset.pattern.permute.xlu0 0
  %55 = vperm.xlu0 %54, %v45
  %v56 = vpop.permute.xlu0 %55
  %59 = vset.pattern.permute.xlu0 0
  %60 = vperm.xlu0 %59, %v46
  %v61 = vpop.permute.xlu0 %60
  %64 = vset.pattern.permute.xlu0 0
  %65 = vperm.xlu0 %64, %v47
  %v66 = vpop.permute.xlu0 %65
  %vm68 = vcmask 293888
  %v70 = vsel %vm68, %v40, 0
  %v73 = vsel %vm68, %v41, 0
  %v76 = vsel %vm68, %v42, 0
  %v79 = vsel %vm68, %v43, 0
  %vm81 = vcmask 1043456
  %v83 = vsel %vm81, %v36, 0
  %v86 = vsel %vm81, %v37, 0
  %v89 = vsel %vm81, %v38, 0
  %v92 = vsel %vm81, %v39, 0
  %94 = vmatpush.msra.mxu0 0.0
  %95 = vmatpush.msra.mxu0 0.0
  %96 = vmatpush.msra.mxu0 0.0
  %97 = vmatpush.msra.mxu0 0.0
  %98 = vmatpush.msra.mxu0 0.0
  %99 = vmatpush.msra.mxu0 0.0
  %100 = vmatpush.msra.mxu0 0.0
  %101 = vmatpush.msra.mxu0 0.0
  %102 = vmatpush.msra.mxu0 0.0
  %103 = vmatpush.msra.mxu0 0.0
  %104 = vmatpush.msra.mxu0 0.0
  %105 = vmatpush.msra.mxu0 %v83
  %106 = vmatpush.msra.mxu0 %v32
  %107 = vmatpush.msra.mxu0 %v28
  %108 = vmatpush.msra.mxu0 %v24
  %109 = vmatpush.msra.mxu0 %v20
  %110 = vmatmul.f32.gmra.mxu0 %v70
  %v111 = vpop.f32.mrf.mxu0
  %v112 = vadd.f32 %v51, %v111
  %113 = vmatmul.f32.gmra.mxu0 %v73
  %v114 = vpop.f32.mrf.mxu0
  %v115 = vadd.f32 %v56, %v114
  %116 = vmatmul.f32.gmra.mxu0 %v76
  %v117 = vpop.f32.mrf.mxu0
  %v118 = vadd.f32 %v61, %v117
  %119 = vmatmul.f32.gmra.mxu0 %v79
  %v120 = vpop.f32.mrf.mxu0
  %v121 = vadd.f32 %v66, %v120
  %122 = vdwg.mxu0
  %123 = vmatpush.msra.mxu0 0.0
  %124 = vmatpush.msra.mxu0 0.0
  %125 = vmatpush.msra.mxu0 0.0
  %126 = vmatpush.msra.mxu0 0.0
  %127 = vmatpush.msra.mxu0 0.0
  %128 = vmatpush.msra.mxu0 0.0
  %129 = vmatpush.msra.mxu0 0.0
  %130 = vmatpush.msra.mxu0 0.0
  %131 = vmatpush.msra.mxu0 0.0
  %132 = vmatpush.msra.mxu0 0.0
  %133 = vmatpush.msra.mxu0 0.0
  %134 = vmatpush.msra.mxu0 %v86
  %135 = vmatpush.msra.mxu0 %v33
  %136 = vmatpush.msra.mxu0 %v29
  %137 = vmatpush.msra.mxu0 %v25
  %138 = vmatpush.msra.mxu0 %v21
  %139 = vmatmul.f32.gmra.mxu0 %v70
  %v140 = vpop.f32.mrf.mxu0
  %v141 = vadd.f32 %v51, %v140
  %142 = vmatmul.f32.gmra.mxu0 %v73
  %v143 = vpop.f32.mrf.mxu0
  %v144 = vadd.f32 %v56, %v143
  %145 = vmatmul.f32.gmra.mxu0 %v76
  %v146 = vpop.f32.mrf.mxu0
  %v147 = vadd.f32 %v61, %v146
  %148 = vmatmul.f32.gmra.mxu0 %v79
  %v149 = vpop.f32.mrf.mxu0
  %v150 = vadd.f32 %v66, %v149
  %151 = vdwg.mxu0
  %152 = vmatpush.msra.mxu0 0.0
  %153 = vmatpush.msra.mxu0 0.0
  %154 = vmatpush.msra.mxu0 0.0
  %155 = vmatpush.msra.mxu0 0.0
  %156 = vmatpush.msra.mxu0 0.0
  %157 = vmatpush.msra.mxu0 0.0
  %158 = vmatpush.msra.mxu0 0.0
  %159 = vmatpush.msra.mxu0 0.0
  %160 = vmatpush.msra.mxu0 0.0
  %161 = vmatpush.msra.mxu0 0.0
  %162 = vmatpush.msra.mxu0 0.0
  %163 = vmatpush.msra.mxu0 %v89
  %164 = vmatpush.msra.mxu0 %v34
  %165 = vmatpush.msra.mxu0 %v30
  %166 = vmatpush.msra.mxu0 %v26
  %167 = vmatpush.msra.mxu0 %v22
  %168 = vmatmul.f32.gmra.mxu0 %v70
  %v169 = vpop.f32.mrf.mxu0
  %v170 = vadd.f32 %v51, %v169
  %171 = vmatmul.f32.gmra.mxu0 %v73
  %v172 = vpop.f32.mrf.mxu0
  %v173 = vadd.f32 %v56, %v172
  %174 = vmatmul.f32.gmra.mxu0 %v76
  %v175 = vpop.f32.mrf.mxu0
  %v176 = vadd.f32 %v61, %v175
  %177 = vmatmul.f32.gmra.mxu0 %v79
  %v178 = vpop.f32.mrf.mxu0
  %v179 = vadd.f32 %v66, %v178
  %180 = vdwg.mxu0
  %181 = vmatpush.msra.mxu0 0.0
  %182 = vmatpush.msra.mxu0 0.0
  %183 = vmatpush.msra.mxu0 0.0
  %184 = vmatpush.msra.mxu0 0.0
  %185 = vmatpush.msra.mxu0 0.0
  %186 = vmatpush.msra.mxu0 0.0
  %187 = vmatpush.msra.mxu0 0.0
  %188 = vmatpush.msra.mxu0 0.0
  %189 = vmatpush.msra.mxu0 0.0
  %190 = vmatpush.msra.mxu0 0.0
  %191 = vmatpush.msra.mxu0 0.0
  %192 = vmatpush.msra.mxu0 %v92
  %193 = vmatpush.msra.mxu0 %v35
  %194 = vmatpush.msra.mxu0 %v31
  %195 = vmatpush.msra.mxu0 %v27
  %196 = vmatpush.msra.mxu0 %v23
  %197 = vmatmul.f32.gmra.mxu0 %v70
  %v198 = vpop.f32.mrf.mxu0
  %v199 = vadd.f32 %v51, %v198
  %200 = vmatmul.f32.gmra.mxu0 %v73
  %v201 = vpop.f32.mrf.mxu0
  %v202 = vadd.f32 %v56, %v201
  %203 = vmatmul.f32.gmra.mxu0 %v76
  %v204 = vpop.f32.mrf.mxu0
  %v205 = vadd.f32 %v61, %v204
  %206 = vmatmul.f32.gmra.mxu0 %v79
  %v207 = vpop.f32.mrf.mxu0
  %v208 = vadd.f32 %v66, %v207
  %209 = vdwg.mxu0
  %v210 = vxor.u32 %v112, 2147483648
  %v211 = vxor.u32 %v141, 2147483648
  %v212 = vxor.u32 %v170, 2147483648
  %v213 = vxor.u32 %v199, 2147483648
  %v214 = vxor.u32 %v115, 2147483648
  %v215 = vxor.u32 %v144, 2147483648
  %v216 = vxor.u32 %v173, 2147483648
  %v217 = vxor.u32 %v202, 2147483648
  %v218 = vxor.u32 %v118, 2147483648
  %v219 = vxor.u32 %v147, 2147483648
  %v220 = vxor.u32 %v176, 2147483648
  %v221 = vxor.u32 %v205, 2147483648
  %v222 = vxor.u32 %v121, 2147483648
  %v223 = vxor.u32 %v150, 2147483648
  %v224 = vxor.u32 %v179, 2147483648
  %v225 = vxor.u32 %v208, 2147483648
  %v226 = vmul.f32 %v210, 1.442695
  %v227 = vpow.pop %v226
  %v228 = vmul.f32 %v211, 1.442695
  %v229 = vpow.pop %v228
  %v230 = vmul.f32 %v212, 1.442695
  %v231 = vpow.pop %v230
  %v232 = vmul.f32 %v213, 1.442695
  %v233 = vpow.pop %v232
  %v234 = vmul.f32 %v214, 1.442695
  %v235 = vpow.pop %v234
  %v236 = vmul.f32 %v215, 1.442695
  %v237 = vpow.pop %v236
  %v238 = vmul.f32 %v216, 1.442695
  %v239 = vpow.pop %v238
  %v240 = vmul.f32 %v217, 1.442695
  %v241 = vpow.pop %v240
  %v242 = vmul.f32 %v218, 1.442695
  %v243 = vpow.pop %v242
  %v244 = vmul.f32 %v219, 1.442695
  %v245 = vpow.pop %v244
  %v246 = vmul.f32 %v220, 1.442695
  %v247 = vpow.pop %v246
  %v248 = vmul.f32 %v221, 1.442695
  %v249 = vpow.pop %v248
  %v250 = vmul.f32 %v222, 1.442695
  %v251 = vpow.pop %v250
  %v252 = vmul.f32 %v223, 1.442695
  %v253 = vpow.pop %v252
  %v254 = vmul.f32 %v224, 1.442695
  %v255 = vpow.pop %v254
  %v256 = vmul.f32 %v225, 1.442695
  %v257 = vpow.pop %v256
  %v258 = vadd.f32 %v227, 1.0
  %v259 = vadd.f32 %v229, 1.0
  %v260 = vadd.f32 %v231, 1.0
  %v261 = vadd.f32 %v233, 1.0
  %v262 = vadd.f32 %v235, 1.0
  %v263 = vadd.f32 %v237, 1.0
  %v264 = vadd.f32 %v239, 1.0
  %v265 = vadd.f32 %v241, 1.0
  %v266 = vadd.f32 %v243, 1.0
  %v267 = vadd.f32 %v245, 1.0
  %v268 = vadd.f32 %v247, 1.0
  %v269 = vadd.f32 %v249, 1.0
  %v270 = vadd.f32 %v251, 1.0
  %v271 = vadd.f32 %v253, 1.0
  %v272 = vadd.f32 %v255, 1.0
  %v273 = vadd.f32 %v257, 1.0
  %v274 = vrcp.pop %v258
  %v275 = vmul.f32 %v258, %v274
  %v276 = vsub.f32 1.0, %v275
  %v277 = vmul.f32 %v274, %v276
  %v278 = vadd.f32 %v274, %v277
  %vm279 = vweird.f32 %v258
  %vm280 = vweird.f32 %v274
  %vm281 = vmor %vm279, %vm280
  %v282 = vsel %vm281, %v274, %v278
  %v283 = vand.u32 2147483647, %v258
  %vm284 = vcmp.eq.f32.partialorder %v283, 8.507059e+37
  %v285 = vand.u32 %v258, 2147483648
  %v286 = vor.u32 1.1754944e-38, %v285
  %v287 = vsel %vm284, %v286, %v282
  %v288 = vmul.f32 1.0, %v287
  %v289 = vrcp.pop %v259
  %v290 = vmul.f32 %v259, %v289
  %v291 = vsub.f32 1.0, %v290
  %v292 = vmul.f32 %v289, %v291
  %v293 = vadd.f32 %v289, %v292
  %vm294 = vweird.f32 %v259
  %vm295 = vweird.f32 %v289
  %vm296 = vmor %vm294, %vm295
  %v297 = vsel %vm296, %v289, %v293
  %v298 = vand.u32 2147483647, %v259
  %vm299 = vcmp.eq.f32.partialorder %v298, 8.507059e+37
  %v300 = vand.u32 %v259, 2147483648
  %v301 = vor.u32 1.1754944e-38, %v300
  %v302 = vsel %vm299, %v301, %v297
  %v303 = vmul.f32 1.0, %v302
  %v304 = vrcp.pop %v260
  %v305 = vmul.f32 %v260, %v304
  %v306 = vsub.f32 1.0, %v305
  %v307 = vmul.f32 %v304, %v306
  %v308 = vadd.f32 %v304, %v307
  %vm309 = vweird.f32 %v260
  %vm310 = vweird.f32 %v304
  %vm311 = vmor %vm309, %vm310
  %v312 = vsel %vm311, %v304, %v308
  %v313 = vand.u32 2147483647, %v260
  %vm314 = vcmp.eq.f32.partialorder %v313, 8.507059e+37
  %v315 = vand.u32 %v260, 2147483648
  %v316 = vor.u32 1.1754944e-38, %v315
  %v317 = vsel %vm314, %v316, %v312
  %v318 = vmul.f32 1.0, %v317
  %v319 = vrcp.pop %v261
  %v320 = vmul.f32 %v261, %v319
  %v321 = vsub.f32 1.0, %v320
  %v322 = vmul.f32 %v319, %v321
  %v323 = vadd.f32 %v319, %v322
  %vm324 = vweird.f32 %v261
  %vm325 = vweird.f32 %v319
  %vm326 = vmor %vm324, %vm325
  %v327 = vsel %vm326, %v319, %v323
  %v328 = vand.u32 2147483647, %v261
  %vm329 = vcmp.eq.f32.partialorder %v328, 8.507059e+37
  %v330 = vand.u32 %v261, 2147483648
  %v331 = vor.u32 1.1754944e-38, %v330
  %v332 = vsel %vm329, %v331, %v327
  %v333 = vmul.f32 1.0, %v332
  %v334 = vrcp.pop %v262
  %v335 = vmul.f32 %v262, %v334
  %v336 = vsub.f32 1.0, %v335
  %v337 = vmul.f32 %v334, %v336
  %v338 = vadd.f32 %v334, %v337
  %vm339 = vweird.f32 %v262
  %vm340 = vweird.f32 %v334
  %vm341 = vmor %vm339, %vm340
  %v342 = vsel %vm341, %v334, %v338
  %v343 = vand.u32 2147483647, %v262
  %vm344 = vcmp.eq.f32.partialorder %v343, 8.507059e+37
  %v345 = vand.u32 %v262, 2147483648
  %v346 = vor.u32 1.1754944e-38, %v345
  %v347 = vsel %vm344, %v346, %v342
  %v348 = vmul.f32 1.0, %v347
  %v349 = vrcp.pop %v263
  %v350 = vmul.f32 %v263, %v349
  %v351 = vsub.f32 1.0, %v350
  %v352 = vmul.f32 %v349, %v351
  %v353 = vadd.f32 %v349, %v352
  %vm354 = vweird.f32 %v263
  %vm355 = vweird.f32 %v349
  %vm356 = vmor %vm354, %vm355
  %v357 = vsel %vm356, %v349, %v353
  %v358 = vand.u32 2147483647, %v263
  %vm359 = vcmp.eq.f32.partialorder %v358, 8.507059e+37
  %v360 = vand.u32 %v263, 2147483648
  %v361 = vor.u32 1.1754944e-38, %v360
  %v362 = vsel %vm359, %v361, %v357
  %v363 = vmul.f32 1.0, %v362
  %v364 = vrcp.pop %v264
  %v365 = vmul.f32 %v264, %v364
  %v366 = vsub.f32 1.0, %v365
  %v367 = vmul.f32 %v364, %v366
  %v368 = vadd.f32 %v364, %v367
  %vm369 = vweird.f32 %v264
  %vm370 = vweird.f32 %v364
  %vm371 = vmor %vm369, %vm370
  %v372 = vsel %vm371, %v364, %v368
  %v373 = vand.u32 2147483647, %v264
  %vm374 = vcmp.eq.f32.partialorder %v373, 8.507059e+37
  %v375 = vand.u32 %v264, 2147483648
  %v376 = vor.u32 1.1754944e-38, %v375
  %v377 = vsel %vm374, %v376, %v372
  %v378 = vmul.f32 1.0, %v377
  %v379 = vrcp.pop %v265
  %v380 = vmul.f32 %v265, %v379
  %v381 = vsub.f32 1.0, %v380
  %v382 = vmul.f32 %v379, %v381
  %v383 = vadd.f32 %v379, %v382
  %vm384 = vweird.f32 %v265
  %vm385 = vweird.f32 %v379
  %vm386 = vmor %vm384, %vm385
  %v387 = vsel %vm386, %v379, %v383
  %v388 = vand.u32 2147483647, %v265
  %vm389 = vcmp.eq.f32.partialorder %v388, 8.507059e+37
  %v390 = vand.u32 %v265, 2147483648
  %v391 = vor.u32 1.1754944e-38, %v390
  %v392 = vsel %vm389, %v391, %v387
  %v393 = vmul.f32 1.0, %v392
  %v394 = vrcp.pop %v266
  %v395 = vmul.f32 %v266, %v394
  %v396 = vsub.f32 1.0, %v395
  %v397 = vmul.f32 %v394, %v396
  %v398 = vadd.f32 %v394, %v397
  %vm399 = vweird.f32 %v266
  %vm400 = vweird.f32 %v394
  %vm401 = vmor %vm399, %vm400
  %v402 = vsel %vm401, %v394, %v398
  %v403 = vand.u32 2147483647, %v266
  %vm404 = vcmp.eq.f32.partialorder %v403, 8.507059e+37
  %v405 = vand.u32 %v266, 2147483648
  %v406 = vor.u32 1.1754944e-38, %v405
  %v407 = vsel %vm404, %v406, %v402
  %v408 = vmul.f32 1.0, %v407
  %v409 = vrcp.pop %v267
  %v410 = vmul.f32 %v267, %v409
  %v411 = vsub.f32 1.0, %v410
  %v412 = vmul.f32 %v409, %v411
  %v413 = vadd.f32 %v409, %v412
  %vm414 = vweird.f32 %v267
  %vm415 = vweird.f32 %v409
  %vm416 = vmor %vm414, %vm415
  %v417 = vsel %vm416, %v409, %v413
  %v418 = vand.u32 2147483647, %v267
  %vm419 = vcmp.eq.f32.partialorder %v418, 8.507059e+37
  %v420 = vand.u32 %v267, 2147483648
  %v421 = vor.u32 1.1754944e-38, %v420
  %v422 = vsel %vm419, %v421, %v417
  %v423 = vmul.f32 1.0, %v422
  %v424 = vrcp.pop %v268
  %v425 = vmul.f32 %v268, %v424
  %v426 = vsub.f32 1.0, %v425
  %v427 = vmul.f32 %v424, %v426
  %v428 = vadd.f32 %v424, %v427
  %vm429 = vweird.f32 %v268
  %vm430 = vweird.f32 %v424
  %vm431 = vmor %vm429, %vm430
  %v432 = vsel %vm431, %v424, %v428
  %v433 = vand.u32 2147483647, %v268
  %vm434 = vcmp.eq.f32.partialorder %v433, 8.507059e+37
  %v435 = vand.u32 %v268, 2147483648
  %v436 = vor.u32 1.1754944e-38, %v435
  %v437 = vsel %vm434, %v436, %v432
  %v438 = vmul.f32 1.0, %v437
  %v439 = vrcp.pop %v269
  %v440 = vmul.f32 %v269, %v439
  %v441 = vsub.f32 1.0, %v440
  %v442 = vmul.f32 %v439, %v441
  %v443 = vadd.f32 %v439, %v442
  %vm444 = vweird.f32 %v269
  %vm445 = vweird.f32 %v439
  %vm446 = vmor %vm444, %vm445
  %v447 = vsel %vm446, %v439, %v443
  %v448 = vand.u32 2147483647, %v269
  %vm449 = vcmp.eq.f32.partialorder %v448, 8.507059e+37
  %v450 = vand.u32 %v269, 2147483648
  %v451 = vor.u32 1.1754944e-38, %v450
  %v452 = vsel %vm449, %v451, %v447
  %v453 = vmul.f32 1.0, %v452
  %v454 = vrcp.pop %v270
  %v455 = vmul.f32 %v270, %v454
  %v456 = vsub.f32 1.0, %v455
  %v457 = vmul.f32 %v454, %v456
  %v458 = vadd.f32 %v454, %v457
  %vm459 = vweird.f32 %v270
  %vm460 = vweird.f32 %v454
  %vm461 = vmor %vm459, %vm460
  %v462 = vsel %vm461, %v454, %v458
  %v463 = vand.u32 2147483647, %v270
  %vm464 = vcmp.eq.f32.partialorder %v463, 8.507059e+37
  %v465 = vand.u32 %v270, 2147483648
  %v466 = vor.u32 1.1754944e-38, %v465
  %v467 = vsel %vm464, %v466, %v462
  %v468 = vmul.f32 1.0, %v467
  %v469 = vrcp.pop %v271
  %v470 = vmul.f32 %v271, %v469
  %v471 = vsub.f32 1.0, %v470
  %v472 = vmul.f32 %v469, %v471
  %v473 = vadd.f32 %v469, %v472
  %vm474 = vweird.f32 %v271
  %vm475 = vweird.f32 %v469
  %vm476 = vmor %vm474, %vm475
  %v477 = vsel %vm476, %v469, %v473
  %v478 = vand.u32 2147483647, %v271
  %vm479 = vcmp.eq.f32.partialorder %v478, 8.507059e+37
  %v480 = vand.u32 %v271, 2147483648
  %v481 = vor.u32 1.1754944e-38, %v480
  %v482 = vsel %vm479, %v481, %v477
  %v483 = vmul.f32 1.0, %v482
  %v484 = vrcp.pop %v272
  %v485 = vmul.f32 %v272, %v484
  %v486 = vsub.f32 1.0, %v485
  %v487 = vmul.f32 %v484, %v486
  %v488 = vadd.f32 %v484, %v487
  %vm489 = vweird.f32 %v272
  %vm490 = vweird.f32 %v484
  %vm491 = vmor %vm489, %vm490
  %v492 = vsel %vm491, %v484, %v488
  %v493 = vand.u32 2147483647, %v272
  %vm494 = vcmp.eq.f32.partialorder %v493, 8.507059e+37
  %v495 = vand.u32 %v272, 2147483648
  %v496 = vor.u32 1.1754944e-38, %v495
  %v497 = vsel %vm494, %v496, %v492
  %v498 = vmul.f32 1.0, %v497
  %v499 = vrcp.pop %v273
  %v500 = vmul.f32 %v273, %v499
  %v501 = vsub.f32 1.0, %v500
  %v502 = vmul.f32 %v499, %v501
  %v503 = vadd.f32 %v499, %v502
  %vm504 = vweird.f32 %v273
  %vm505 = vweird.f32 %v499
  %vm506 = vmor %vm504, %vm505
  %v507 = vsel %vm506, %v499, %v503
  %v508 = vand.u32 2147483647, %v273
  %vm509 = vcmp.eq.f32.partialorder %v508, 8.507059e+37
  %v510 = vand.u32 %v273, 2147483648
  %v511 = vor.u32 1.1754944e-38, %v510
  %v512 = vsel %vm509, %v511, %v507
  %v513 = vmul.f32 1.0, %v512
  %v514 = vmul.f32 %v112, %v288
  %v515 = vmul.f32 %v141, %v303
  %v516 = vmul.f32 %v170, %v318
  %v517 = vmul.f32 %v199, %v333
  %v518 = vmul.f32 %v115, %v348
  %v519 = vmul.f32 %v144, %v363
  %v520 = vmul.f32 %v173, %v378
  %v521 = vmul.f32 %v202, %v393
  %v522 = vmul.f32 %v118, %v408
  %v523 = vmul.f32 %v147, %v423
  %v524 = vmul.f32 %v176, %v438
  %v525 = vmul.f32 %v205, %v453
  %v526 = vmul.f32 %v121, %v468
  %v527 = vmul.f32 %v150, %v483
  %v528 = vmul.f32 %v179, %v498
  %v529 = vmul.f32 %v208, %v513
  %v530 = vld [vmem:[%s3] sm:$0xff]
  %v531 = vld [vmem:[%s3 + $0x8] sm:$0xff]
  %v532 = vld [vmem:[%s3 + $0x10] sm:$0xf]
  %v533 = vld [vmem:[%s4] sm:$0xff]
  %v534 = vld [vmem:[%s4 + $0x8] sm:$0xff]
  %v535 = vld [vmem:[%s4 + $0x10] sm:$0xf]
  %537 = vset.pattern.permute.xlu0 0
  %538 = vperm.xlu0 %537, %v533
  %v539 = vpop.permute.xlu0 %538
  %542 = vset.pattern.permute.xlu0 0
  %543 = vperm.xlu0 %542, %v534
  %v544 = vpop.permute.xlu0 %543
  %547 = vset.pattern.permute.xlu0 0
  %548 = vperm.xlu0 %547, %v535
  %v549 = vpop.permute.xlu0 %548
  %vm551 = vcmask 261120
  %v553 = vsel %vm551, %v530, 0
  %v556 = vsel %vm551, %v531, 0
  %v559 = vsel %vm551, %v532, 0
  %561 = vmatpush.msra.mxu0 0.0
  %562 = vmatpush.msra.mxu0 0.0
  %563 = vmatpush.msra.mxu0 0.0
  %564 = vmatpush.msra.mxu0 0.0
  %565 = vmatpush.msra.mxu0 0.0
  %566 = vmatpush.msra.mxu0 0.0
  %567 = vmatpush.msra.mxu0 0.0
  %568 = vmatpush.msra.mxu0 0.0
  %569 = vmatpush.msra.mxu0 0.0
  %570 = vmatpush.msra.mxu0 0.0
  %571 = vmatpush.msra.mxu0 0.0
  %572 = vmatpush.msra.mxu0 0.0
  %573 = vmatpush.msra.mxu0 %v526
  %574 = vmatpush.msra.mxu0 %v522
  %575 = vmatpush.msra.mxu0 %v518
  %576 = vmatpush.msra.mxu0 %v514
  %577 = vmatmul.f32.gmra.mxu0 %v553
  %v578 = vpop.f32.mrf.mxu0
  %v579 = vadd.f32 %v539, %v578
  %580 = vmatmul.f32.gmra.mxu0 %v556
  %v581 = vpop.f32.mrf.mxu0
  %v582 = vadd.f32 %v544, %v581
  %583 = vmatmul.f32.gmra.mxu0 %v559
  %v584 = vpop.f32.mrf.mxu0
  %v585 = vadd.f32 %v549, %v584
  %586 = vdwg.mxu0
  %587 = vmatpush.msra.mxu0 0.0
  %588 = vmatpush.msra.mxu0 0.0
  %589 = vmatpush.msra.mxu0 0.0
  %590 = vmatpush.msra.mxu0 0.0
  %591 = vmatpush.msra.mxu0 0.0
  %592 = vmatpush.msra.mxu0 0.0
  %593 = vmatpush.msra.mxu0 0.0
  %594 = vmatpush.msra.mxu0 0.0
  %595 = vmatpush.msra.mxu0 0.0
  %596 = vmatpush.msra.mxu0 0.0
  %597 = vmatpush.msra.mxu0 0.0
  %598 = vmatpush.msra.mxu0 0.0
  %599 = vmatpush.msra.mxu0 %v527
  %600 = vmatpush.msra.mxu0 %v523
  %601 = vmatpush.msra.mxu0 %v519
  %602 = vmatpush.msra.mxu0 %v515
  %603 = vmatmul.f32.gmra.mxu0 %v553
  %v604 = vpop.f32.mrf.mxu0
  %v605 = vadd.f32 %v539, %v604
  %606 = vmatmul.f32.gmra.mxu0 %v556
  %v607 = vpop.f32.mrf.mxu0
  %v608 = vadd.f32 %v544, %v607
  %609 = vmatmul.f32.gmra.mxu0 %v559
  %v610 = vpop.f32.mrf.mxu0
  %v611 = vadd.f32 %v549, %v610
  %612 = vdwg.mxu0
  %613 = vmatpush.msra.mxu0 0.0
  %614 = vmatpush.msra.mxu0 0.0
  %615 = vmatpush.msra.mxu0 0.0
  %616 = vmatpush.msra.mxu0 0.0
  %617 = vmatpush.msra.mxu0 0.0
  %618 = vmatpush.msra.mxu0 0.0
  %619 = vmatpush.msra.mxu0 0.0
  %620 = vmatpush.msra.mxu0 0.0
  %621 = vmatpush.msra.mxu0 0.0
  %622 = vmatpush.msra.mxu0 0.0
  %623 = vmatpush.msra.mxu0 0.0
  %624 = vmatpush.msra.mxu0 0.0
  %625 = vmatpush.msra.mxu0 %v528
  %626 = vmatpush.msra.mxu0 %v524
  %627 = vmatpush.msra.mxu0 %v520
  %628 = vmatpush.msra.mxu0 %v516
  %629 = vmatmul.f32.gmra.mxu0 %v553
  %v630 = vpop.f32.mrf.mxu0
  %v631 = vadd.f32 %v539, %v630
  %632 = vmatmul.f32.gmra.mxu0 %v556
  %v633 = vpop.f32.mrf.mxu0
  %v634 = vadd.f32 %v544, %v633
  %635 = vmatmul.f32.gmra.mxu0 %v559
  %v636 = vpop.f32.mrf.mxu0
  %v637 = vadd.f32 %v549, %v636
  %638 = vdwg.mxu0
  %639 = vmatpush.msra.mxu0 0.0
  %640 = vmatpush.msra.mxu0 0.0
  %641 = vmatpush.msra.mxu0 0.0
  %642 = vmatpush.msra.mxu0 0.0
  %643 = vmatpush.msra.mxu0 0.0
  %644 = vmatpush.msra.mxu0 0.0
  %645 = vmatpush.msra.mxu0 0.0
  %646 = vmatpush.msra.mxu0 0.0
  %647 = vmatpush.msra.mxu0 0.0
  %648 = vmatpush.msra.mxu0 0.0
  %649 = vmatpush.msra.mxu0 0.0
  %650 = vmatpush.msra.mxu0 0.0
  %651 = vmatpush.msra.mxu0 %v529
  %652 = vmatpush.msra.mxu0 %v525
  %653 = vmatpush.msra.mxu0 %v521
  %654 = vmatpush.msra.mxu0 %v517
  %655 = vmatmul.f32.gmra.mxu0 %v553
  %v656 = vpop.f32.mrf.mxu0
  %v657 = vadd.f32 %v539, %v656
  %658 = vmatmul.f32.gmra.mxu0 %v556
  %v659 = vpop.f32.mrf.mxu0
  %v660 = vadd.f32 %v544, %v659
  %661 = vmatmul.f32.gmra.mxu0 %v559
  %v662 = vpop.f32.mrf.mxu0
  %v663 = vadd.f32 %v549, %v662
  %664 = vdwg.mxu0
  %665 = vst [vmem:[%s5] sm:$0xff] %v579
  %666 = vst [vmem:[%s5 + $0x8] sm:$0xff] %v605
  %667 = vst [vmem:[%s5 + $0x10] sm:$0xff] %v582
  %668 = vst [vmem:[%s5 + $0x18] sm:$0xff] %v608
  %669 = vst [vmem:[%s5 + $0x20] sm:$0xf] %v585
  %670 = vst [vmem:[%s5 + $0x28] sm:$0xf] %v611
  %s671 = scalar_lea.vmem %s5, 48
  %672 = vst [vmem:[%s671] sm:$0xff] %v631
  %673 = vst [vmem:[%s671 + $0x8] sm:$0xff] %v657
  %674 = vst [vmem:[%s671 + $0x10] sm:$0xff] %v634
  %675 = vst [vmem:[%s671 + $0x18] sm:$0xff] %v660
  %676 = vst [vmem:[%s671 + $0x20] sm:$0xf] %v637
  %677 = vst [vmem:[%s671 + $0x28] sm:$0xf] %v663
  // Predicated region
  $region22: #{detector_forward.1} parent=0 // pred_check
    _
  $region23: #{detector_forward.1} parent=0 // pred_check_branch
    %679 = sbr.rel (0) target = $region25
  $region24: #{detector_forward.1} parent=0 // pred_region
    _
  $region25: #{detector_forward.1} parent=0 // pred_fallthru
    _
  // Predicated region
  $region26: #{detector_forward.1} parent=0 // pred_check
    _
  $region27: #{detector_forward.1} parent=0 // pred_check_branch
    %681 = sbr.rel (0) target = $region29
  $region28: #{detector_forward.1} parent=0 // pred_region
    _
  $region29: #{detector_forward.1} parent=0 // pred_fallthru
    _

</llo_original>
